<compile_context>
chip_gen: v7x
topology: tpu7x:2x2x1
jax: 0.10.0
libtpu: 0.0.40
codegen_flags: <defaults>
</compile_context>

<pallas_src>
import jax
import jax.numpy as jnp
from jax.experimental import pallas as pl
from jax.experimental.pallas import tpu as pltpu


# --------------------------------------------------------------------------
# Fused kernel: one batch element per grid step.
#   xyzT_ref  : (3, N)   channels-first point cloud (lane-dense over N)
#   center_ref: (3, G)   FPS centers, channels-first
#   nbr_ref   : (3, G, K) neighborhood minus center, channels-first
# --------------------------------------------------------------------------
def group_kernel(xyzT_ref, center_ref, nbr_ref):
    xt = xyzT_ref[...]                                    # (3, N)
    N = xt.shape[1]
    G = center_ref.shape[1]
    K = nbr_ref.shape[2]

    xr = xt[0:1, :]                                       # (1, N)
    yr = xt[1:2, :]                                       # (1, N)
    zr = xt[2:3, :]                                       # (1, N)

    # Hoisted iotas (JAX does not CSE broadcast_in_dim inside traced loops).
    iota_n = jax.lax.broadcasted_iota(jnp.int32, (1, N), 1)     # (1, N)
    iota_gn = jax.lax.broadcasted_iota(jnp.int32, (G, N), 1)    # (G, N)
    iota_3g = jax.lax.broadcasted_iota(jnp.int32, (3, G), 1)    # (3, G)
    iota_gk = jax.lax.broadcasted_iota(jnp.int32, (G, K), 1)    # (G, K)

    # ---------------- Farthest point sampling (start at index 0) -----------
    first = xt[:, 0:1]                                    # (3, 1)
    d0 = ((xr - first[0:1, :]) ** 2
          + (yr - first[1:2, :]) ** 2
          + (zr - first[2:3, :]) ** 2)                    # (1, N)
    c0 = jnp.where(iota_3g == 0, first, 0.0)              # (3, G), col 0 = first

    def fps_body(i, carry):
        min_d, cx = carry                                 # (1, N), (3, G)
        max_v = jnp.max(min_d, axis=-1, keepdims=True)                    # (1, 1)
        sel_idx = jnp.min(jnp.where(min_d >= max_v, iota_n, N),
                          axis=-1, keepdims=True)                         # (1, 1)
        sel_mask = iota_n == sel_idx                                      # (1, N)
        # masked lane-reduce: exact copy of the selected point's coords
        new_pt = jnp.sum(jnp.where(sel_mask, xt, 0.0),
                         axis=-1, keepdims=True)                          # (3, 1)
        d = ((xr - new_pt[0:1, :]) ** 2
             + (yr - new_pt[1:2, :]) ** 2
             + (zr - new_pt[2:3, :]) ** 2)                                # (1, N)
        min_d = jnp.minimum(min_d, d)
        cx = jnp.where(iota_3g == i, new_pt, cx)                          # (3, G)
        return min_d, cx

    _, cx3g = jax.lax.fori_loop(1, G, fps_body, (d0, c0))
    center_ref[...] = cx3g.astype(center_ref.dtype)       # single (3, G) store

    # ---------------- KNN + gather + center subtraction --------------------
    cg3 = cx3g.T                                          # (G, 3) tiny transpose, once
    cgx = cg3[:, 0:1]                                     # (G, 1)
    cgy = cg3[:, 1:2]
    cgz = cg3[:, 2:3]

    # full (G, N) squared-distance matrix, pure VPU broadcasts
    dist0 = (xr - cgx) ** 2 + (yr - cgy) ** 2 + (zr - cgz) ** 2   # (G, N)

    zeros_gk = jnp.zeros((G, K), jnp.float32)

    def knn_body(k, carry):
        dist, relx, rely, relz = carry
        min_v = jnp.min(dist, axis=-1, keepdims=True)                     # (G, 1)
        sel_idx = jnp.min(jnp.where(dist <= min_v, iota_gn, N),
                          axis=-1, keepdims=True)                         # (G, 1)
        one_hot = iota_gn == sel_idx                                      # (G, N)
        # gather selected point coords via masked lane-reductions (no MXU)
        sx = jnp.sum(jnp.where(one_hot, xr, 0.0), axis=-1, keepdims=True)  # (G, 1)
        sy = jnp.sum(jnp.where(one_hot, yr, 0.0), axis=-1, keepdims=True)
        sz = jnp.sum(jnp.where(one_hot, zr, 0.0), axis=-1, keepdims=True)
        relx = jnp.where(iota_gk == k, sx - cgx, relx)                    # (G, K)
        rely = jnp.where(iota_gk == k, sy - cgy, rely)
        relz = jnp.where(iota_gk == k, sz - cgz, relz)
        # mask the selected points so the next iteration picks the next-nearest
        dist = jnp.where(one_hot, jnp.float32(1e30), dist)
        return dist, relx, rely, relz

    _, relx, rely, relz = jax.lax.fori_loop(
        0, K, knn_body, (dist0, zeros_gk, zeros_gk, zeros_gk))

    # three lane-dense (G, K) stores, once per batch element
    nbr_ref[0, :, :] = relx.astype(nbr_ref.dtype)
    nbr_ref[1, :, :] = rely.astype(nbr_ref.dtype)
    nbr_ref[2, :, :] = relz.astype(nbr_ref.dtype)


# --------------------------------------------------------------------------
# Wrapper
# --------------------------------------------------------------------------
def group_forward(xyz, num_group, group_size):
    B, N, _ = xyz.shape
    G, K = num_group, group_size

    # channels-first for lane-dense in-kernel math
    xyz_t = jnp.transpose(xyz, (0, 2, 1))                 # (B, 3, N)

    center_cf, nbr_cf = pl.pallas_call(
        group_kernel,
        out_shape=(
            jax.ShapeDtypeStruct((B, 3, G), xyz.dtype),
            jax.ShapeDtypeStruct((B, 3, G, K), xyz.dtype),
        ),
        grid=(B,),
        in_specs=[pl.BlockSpec((None, 3, N), lambda b: (b, 0, 0))],
        out_specs=(
            pl.BlockSpec((None, 3, G), lambda b: (b, 0, 0)),
            pl.BlockSpec((None, 3, G, K), lambda b: (b, 0, 0, 0)),
        ),
        compiler_params=pltpu.CompilerParams(
            dimension_semantics=("parallel",)),
    )(xyz_t)

    center = jnp.transpose(center_cf, (0, 2, 1))          # (B, G, 3)
    neighborhood = jnp.transpose(nbr_cf, (0, 2, 3, 1))    # (B, G, K, 3)
    return neighborhood, center


if __name__ == "__main__":
    key = jax.random.PRNGKey(0)
    B, N = 2, 128
    num_group, group_size = 8, 16

    xyz = jax.random.normal(key, (B, N, 3), dtype=jnp.float32)

    neighborhood, center = group_forward(xyz, num_group, group_size)
    jax.block_until_ready((neighborhood, center))

    assert neighborhood.shape == (B, num_group, group_size, 3)
    assert center.shape == (B, num_group, 3)
    assert jnp.all(jnp.isfinite(neighborhood)) and jnp.all(jnp.isfinite(center))

    # sanity: every FPS center must coincide exactly with an input point
    d_cx = jnp.min(
        jnp.sum((center[:, :, None, :] - xyz[:, None, :, :]) ** 2, axis=-1),
        axis=-1)
    assert float(jnp.max(d_cx)) < 1e-10

    print("KERNEL_OK")
</pallas_src>

<mosaic_0001>
module attributes {stable_mosaic.version = 11 : i64} {
  func.func @group_kernel(%arg0: i32, %arg1: memref<1x3x128xf32, #tpu.memory_space<vmem>>, %arg2: memref<1x3x8xf32, #tpu.memory_space<vmem>>, %arg3: memref<1x3x8x16xf32, #tpu.memory_space<vmem>>) attributes {dimension_semantics = [#tpu.dimension_semantics<parallel>], iteration_bounds = array<i64: 2>, scalar_prefetch = 0 : i64, scratch_operands = 0 : i64, tpu.core_type = #tpu.core_type<tc>, window_params = [{transform_indices = @transform_0, window_bounds = array<i64: 1, 3, 128>}, {transform_indices = @transform_1, window_bounds = array<i64: 1, 3, 8>}, {transform_indices = @transform_2, window_bounds = array<i64: 1, 3, 8, 16>}]} {
    %c0 = arith.constant 0 : index
    %c0_0 = arith.constant 0 : index
    %c0_1 = arith.constant 0 : index
    %0 = vector.load %arg1[%c0, %c0_0, %c0_1] : memref<1x3x128xf32, #tpu.memory_space<vmem>>, vector<1x3x128xf32>
    %1 = vector.shape_cast %0 : vector<1x3x128xf32> to vector<3x128xf32>
    %2 = vector.extract_strided_slice %1 {offsets = [0, 0], sizes = [1, 128], strides = [1, 1]} : vector<3x128xf32> to vector<1x128xf32>
    %3 = vector.extract_strided_slice %1 {offsets = [1, 0], sizes = [1, 128], strides = [1, 1]} : vector<3x128xf32> to vector<1x128xf32>
    %4 = vector.extract_strided_slice %1 {offsets = [2, 0], sizes = [1, 128], strides = [1, 1]} : vector<3x128xf32> to vector<1x128xf32>
    %5 = tpu.iota {dimensions = array<i32: 1>} : vector<1x128xi32>
    %6 = tpu.iota {dimensions = array<i32: 1>} : vector<8x128xi32>
    %7 = tpu.iota {dimensions = array<i32: 1>} : vector<3x8xi32>
    %8 = tpu.iota {dimensions = array<i32: 1>} : vector<8x16xi32>
    %9 = vector.extract_strided_slice %1 {offsets = [0, 0], sizes = [3, 1], strides = [1, 1]} : vector<3x128xf32> to vector<3x1xf32>
    %10 = vector.extract_strided_slice %9 {offsets = [0, 0], sizes = [1, 1], strides = [1, 1]} : vector<3x1xf32> to vector<1x1xf32>
    %11 = vector.broadcast %10 : vector<1x1xf32> to vector<1x128xf32>
    %12 = arith.subf %2, %11 : vector<1x128xf32>
    %13 = arith.mulf %12, %12 : vector<1x128xf32>
    %14 = vector.extract_strided_slice %9 {offsets = [1, 0], sizes = [1, 1], strides = [1, 1]} : vector<3x1xf32> to vector<1x1xf32>
    %15 = vector.broadcast %14 : vector<1x1xf32> to vector<1x128xf32>
    %16 = arith.subf %3, %15 : vector<1x128xf32>
    %17 = arith.mulf %16, %16 : vector<1x128xf32>
    %18 = arith.addf %13, %17 : vector<1x128xf32>
    %19 = vector.extract_strided_slice %9 {offsets = [2, 0], sizes = [1, 1], strides = [1, 1]} : vector<3x1xf32> to vector<1x1xf32>
    %20 = vector.broadcast %19 : vector<1x1xf32> to vector<1x128xf32>
    %21 = arith.subf %4, %20 : vector<1x128xf32>
    %22 = arith.mulf %21, %21 : vector<1x128xf32>
    %23 = arith.addf %18, %22 : vector<1x128xf32>
    %c0_i32 = arith.constant 0 : i32
    %24 = vector.broadcast %c0_i32 : i32 to vector<3x8xi32>
    %25 = arith.cmpi eq, %7, %24 : vector<3x8xi32>
    %cst = arith.constant 0.000000e+00 : f32
    %26 = vector.shape_cast %9 : vector<3x1xf32> to vector<3x1xf32>
    %27 = vector.broadcast %26 : vector<3x1xf32> to vector<3x8xf32>
    %28 = vector.broadcast %cst : f32 to vector<3x8xf32>
    %29 = arith.select %25, %27, %28 : vector<3x8xi1>, vector<3x8xf32>
    %c1_i32 = arith.constant 1 : i32
    %c7_i32 = arith.constant 7 : i32
    %30 = arith.addi %c1_i32, %c7_i32 : i32
    %c1_i32_2 = arith.constant 1 : i32
    %31:2 = scf.for %arg4 = %c1_i32 to %30 step %c1_i32_2 iter_args(%arg5 = %23, %arg6 = %29) -> (vector<1x128xf32>, vector<3x8xf32>)  : i32 {
      %cst_21 = arith.constant dense<0xFF800000> : vector<1xf32>
      %65 = vector.multi_reduction <maximumf>, %arg5, %cst_21 [1] : vector<1x128xf32> to vector<1xf32>
      %66 = vector.shape_cast %65 : vector<1xf32> to vector<1x1xf32>
      %67 = vector.broadcast %66 : vector<1x1xf32> to vector<1x128xf32>
      %68 = arith.cmpf oge, %arg5, %67 : vector<1x128xf32>
      %c128_i32 = arith.constant 128 : i32
      %69 = vector.broadcast %c128_i32 : i32 to vector<1x128xi32>
      %70 = arith.select %68, %5, %69 : vector<1x128xi1>, vector<1x128xi32>
      %cst_22 = arith.constant dense<2147483647> : vector<1xi32>
      %71 = vector.multi_reduction <minsi>, %70, %cst_22 [1] : vector<1x128xi32> to vector<1xi32>
      %72 = vector.shape_cast %71 : vector<1xi32> to vector<1x1xi32>
      %73 = vector.broadcast %72 : vector<1x1xi32> to vector<1x128xi32>
      %74 = arith.cmpi eq, %5, %73 : vector<1x128xi32>
      %cst_23 = arith.constant 0.000000e+00 : f32
      %75 = vector.shape_cast %74 : vector<1x128xi1> to vector<1x128xi1>
      %76 = vector.broadcast %75 : vector<1x128xi1> to vector<3x128xi1>
      %77 = vector.broadcast %cst_23 : f32 to vector<3x128xf32>
      %78 = arith.select %76, %1, %77 : vector<3x128xi1>, vector<3x128xf32>
      %cst_24 = arith.constant dense<0.000000e+00> : vector<3xf32>
      %79 = vector.multi_reduction <add>, %78, %cst_24 [1] : vector<3x128xf32> to vector<3xf32>
      %80 = vector.shape_cast %79 : vector<3xf32> to vector<3x1xf32>
      %81 = vector.extract_strided_slice %80 {offsets = [0, 0], sizes = [1, 1], strides = [1, 1]} : vector<3x1xf32> to vector<1x1xf32>
      %82 = vector.broadcast %81 : vector<1x1xf32> to vector<1x128xf32>
      %83 = arith.subf %2, %82 : vector<1x128xf32>
      %84 = arith.mulf %83, %83 : vector<1x128xf32>
      %85 = vector.extract_strided_slice %80 {offsets = [1, 0], sizes = [1, 1], strides = [1, 1]} : vector<3x1xf32> to vector<1x1xf32>
      %86 = vector.broadcast %85 : vector<1x1xf32> to vector<1x128xf32>
      %87 = arith.subf %3, %86 : vector<1x128xf32>
      %88 = arith.mulf %87, %87 : vector<1x128xf32>
      %89 = arith.addf %84, %88 : vector<1x128xf32>
      %90 = vector.extract_strided_slice %80 {offsets = [2, 0], sizes = [1, 1], strides = [1, 1]} : vector<3x1xf32> to vector<1x1xf32>
      %91 = vector.broadcast %90 : vector<1x1xf32> to vector<1x128xf32>
      %92 = arith.subf %4, %91 : vector<1x128xf32>
      %93 = arith.mulf %92, %92 : vector<1x128xf32>
      %94 = arith.addf %89, %93 : vector<1x128xf32>
      %95 = arith.minimumf %arg5, %94 : vector<1x128xf32>
      %96 = vector.broadcast %arg4 : i32 to vector<3x8xi32>
      %97 = arith.cmpi eq, %7, %96 : vector<3x8xi32>
      %98 = vector.shape_cast %80 : vector<3x1xf32> to vector<3x1xf32>
      %99 = vector.broadcast %98 : vector<3x1xf32> to vector<3x8xf32>
      %100 = arith.select %97, %99, %arg6 : vector<3x8xi1>, vector<3x8xf32>
      scf.yield %95, %100 : vector<1x128xf32>, vector<3x8xf32>
    }
    %c7_i32_3 = arith.constant 7 : i32
    %c0_4 = arith.constant 0 : index
    %c0_5 = arith.constant 0 : index
    %c0_6 = arith.constant 0 : index
    %32 = vector.load %arg2[%c0_4, %c0_5, %c0_6] : memref<1x3x8xf32, #tpu.memory_space<vmem>>, vector<1x3x8xf32>
    %33 = vector.shape_cast %32 : vector<1x3x8xf32> to vector<3x8xf32>
    %34 = vector.shape_cast %31#1 : vector<3x8xf32> to vector<1x3x8xf32>
    tpu.vector_store %arg2[%c0_4, %c0_5, %c0_6], %34 {strides = array<i32>} : memref<1x3x8xf32, #tpu.memory_space<vmem>>, vector<1x3x8xf32>,
    %35 = tpu.transpose %31#1, [1, 0] : vector<3x8xf32> -> vector<8x3xf32>
    %36 = vector.extract_strided_slice %35 {offsets = [0, 0], sizes = [8, 1], strides = [1, 1]} : vector<8x3xf32> to vector<8x1xf32>
    %37 = vector.extract_strided_slice %35 {offsets = [0, 1], sizes = [8, 1], strides = [1, 1]} : vector<8x3xf32> to vector<8x1xf32>
    %38 = vector.extract_strided_slice %35 {offsets = [0, 2], sizes = [8, 1], strides = [1, 1]} : vector<8x3xf32> to vector<8x1xf32>
    %39 = vector.broadcast %2 : vector<1x128xf32> to vector<8x128xf32>
    %40 = vector.broadcast %36 : vector<8x1xf32> to vector<8x128xf32>
    %41 = arith.subf %39, %40 : vector<8x128xf32>
    %42 = arith.mulf %41, %41 : vector<8x128xf32>
    %43 = vector.broadcast %3 : vector<1x128xf32> to vector<8x128xf32>
    %44 = vector.broadcast %37 : vector<8x1xf32> to vector<8x128xf32>
    %45 = arith.subf %43, %44 : vector<8x128xf32>
    %46 = arith.mulf %45, %45 : vector<8x128xf32>
    %47 = arith.addf %42, %46 : vector<8x128xf32>
    %48 = vector.broadcast %4 : vector<1x128xf32> to vector<8x128xf32>
    %49 = vector.broadcast %38 : vector<8x1xf32> to vector<8x128xf32>
    %50 = arith.subf %48, %49 : vector<8x128xf32>
    %51 = arith.mulf %50, %50 : vector<8x128xf32>
    %52 = arith.addf %47, %51 : vector<8x128xf32>
    %cst_7 = arith.constant 0.000000e+00 : f32
    %53 = vector.broadcast %cst_7 : f32 to vector<8x16xf32>
    %c0_i32_8 = arith.constant 0 : i32
    %c16_i32 = arith.constant 16 : i32
    %54 = arith.addi %c0_i32_8, %c16_i32 : i32
    %c1_i32_9 = arith.constant 1 : i32
    %55:4 = scf.for %arg4 = %c0_i32_8 to %54 step %c1_i32_9 iter_args(%arg5 = %52, %arg6 = %53, %arg7 = %53, %arg8 = %53) -> (vector<8x128xf32>, vector<8x16xf32>, vector<8x16xf32>, vector<8x16xf32>)  : i32 {
      %cst_21 = arith.constant dense<0x7F800000> : vector<8xf32>
      %65 = vector.multi_reduction <minimumf>, %arg5, %cst_21 [1] : vector<8x128xf32> to vector<8xf32>
      %66 = vector.shape_cast %65 : vector<8xf32> to vector<8x1xf32>
      %67 = vector.broadcast %66 : vector<8x1xf32> to vector<8x128xf32>
      %68 = arith.cmpf ole, %arg5, %67 : vector<8x128xf32>
      %c128_i32 = arith.constant 128 : i32
      %69 = vector.broadcast %c128_i32 : i32 to vector<8x128xi32>
      %70 = arith.select %68, %6, %69 : vector<8x128xi1>, vector<8x128xi32>
      %cst_22 = arith.constant dense<2147483647> : vector<8xi32>
      %71 = vector.multi_reduction <minsi>, %70, %cst_22 [1] : vector<8x128xi32> to vector<8xi32>
      %72 = vector.shape_cast %71 : vector<8xi32> to vector<8x1xi32>
      %73 = vector.broadcast %72 : vector<8x1xi32> to vector<8x128xi32>
      %74 = arith.cmpi eq, %6, %73 : vector<8x128xi32>
      %cst_23 = arith.constant 0.000000e+00 : f32
      %75 = vector.shape_cast %2 : vector<1x128xf32> to vector<1x128xf32>
      %76 = vector.broadcast %75 : vector<1x128xf32> to vector<8x128xf32>
      %77 = vector.broadcast %cst_23 : f32 to vector<8x128xf32>
      %78 = arith.select %74, %76, %77 : vector<8x128xi1>, vector<8x128xf32>
      %cst_24 = arith.constant dense<0.000000e+00> : vector<8xf32>
      %79 = vector.multi_reduction <add>, %78, %cst_24 [1] : vector<8x128xf32> to vector<8xf32>
      %80 = vector.shape_cast %79 : vector<8xf32> to vector<8x1xf32>
      %cst_25 = arith.constant 0.000000e+00 : f32
      %81 = vector.shape_cast %3 : vector<1x128xf32> to vector<1x128xf32>
      %82 = vector.broadcast %81 : vector<1x128xf32> to vector<8x128xf32>
      %83 = vector.broadcast %cst_25 : f32 to vector<8x128xf32>
      %84 = arith.select %74, %82, %83 : vector<8x128xi1>, vector<8x128xf32>
      %cst_26 = arith.constant dense<0.000000e+00> : vector<8xf32>
      %85 = vector.multi_reduction <add>, %84, %cst_26 [1] : vector<8x128xf32> to vector<8xf32>
      %86 = vector.shape_cast %85 : vector<8xf32> to vector<8x1xf32>
      %cst_27 = arith.constant 0.000000e+00 : f32
      %87 = vector.shape_cast %4 : vector<1x128xf32> to vector<1x128xf32>
      %88 = vector.broadcast %87 : vector<1x128xf32> to vector<8x128xf32>
      %89 = vector.broadcast %cst_27 : f32 to vector<8x128xf32>
      %90 = arith.select %74, %88, %89 : vector<8x128xi1>, vector<8x128xf32>
      %cst_28 = arith.constant dense<0.000000e+00> : vector<8xf32>
      %91 = vector.multi_reduction <add>, %90, %cst_28 [1] : vector<8x128xf32> to vector<8xf32>
      %92 = vector.shape_cast %91 : vector<8xf32> to vector<8x1xf32>
      %93 = vector.broadcast %arg4 : i32 to vector<8x16xi32>
      %94 = arith.cmpi eq, %8, %93 : vector<8x16xi32>
      %95 = arith.subf %80, %36 : vector<8x1xf32>
      %96 = vector.shape_cast %95 : vector<8x1xf32> to vector<8x1xf32>
      %97 = vector.broadcast %96 : vector<8x1xf32> to vector<8x16xf32>
      %98 = arith.select %94, %97, %arg6 : vector<8x16xi1>, vector<8x16xf32>
      %99 = vector.broadcast %arg4 : i32 to vector<8x16xi32>
      %100 = arith.cmpi eq, %8, %99 : vector<8x16xi32>
      %101 = arith.subf %86, %37 : vector<8x1xf32>
      %102 = vector.shape_cast %101 : vector<8x1xf32> to vector<8x1xf32>
      %103 = vector.broadcast %102 : vector<8x1xf32> to vector<8x16xf32>
      %104 = arith.select %100, %103, %arg7 : vector<8x16xi1>, vector<8x16xf32>
      %105 = vector.broadcast %arg4 : i32 to vector<8x16xi32>
      %106 = arith.cmpi eq, %8, %105 : vector<8x16xi32>
      %107 = arith.subf %92, %38 : vector<8x1xf32>
      %108 = vector.shape_cast %107 : vector<8x1xf32> to vector<8x1xf32>
      %109 = vector.broadcast %108 : vector<8x1xf32> to vector<8x16xf32>
      %110 = arith.select %106, %109, %arg8 : vector<8x16xi1>, vector<8x16xf32>
      %cst_29 = arith.constant 1.000000e+30 : f32
      %111 = vector.broadcast %cst_29 : f32 to vector<8x128xf32>
      %112 = arith.select %74, %111, %arg5 : vector<8x128xi1>, vector<8x128xf32>
      scf.yield %112, %98, %104, %110 : vector<8x128xf32>, vector<8x16xf32>, vector<8x16xf32>, vector<8x16xf32>
    }
    %c16_i32_10 = arith.constant 16 : i32
    %c0_11 = arith.constant 0 : index
    %c0_12 = arith.constant 0 : index
    %c0_13 = arith.constant 0 : index
    %c0_14 = arith.constant 0 : index
    %56 = vector.load %arg3[%c0_11, %c0_12, %c0_13, %c0_14] : memref<1x3x8x16xf32, #tpu.memory_space<vmem>>, vector<1x1x8x16xf32>
    %57 = vector.shape_cast %56 : vector<1x1x8x16xf32> to vector<8x16xf32>
    %58 = vector.shape_cast %55#1 : vector<8x16xf32> to vector<1x1x8x16xf32>
    tpu.vector_store %arg3[%c0_11, %c0_12, %c0_13, %c0_14], %58 {strides = array<i32>} : memref<1x3x8x16xf32, #tpu.memory_space<vmem>>, vector<1x1x8x16xf32>,
    %c0_15 = arith.constant 0 : index
    %c1 = arith.constant 1 : index
    %c0_16 = arith.constant 0 : index
    %c0_17 = arith.constant 0 : index
    %59 = vector.load %arg3[%c0_15, %c1, %c0_16, %c0_17] : memref<1x3x8x16xf32, #tpu.memory_space<vmem>>, vector<1x1x8x16xf32>
    %60 = vector.shape_cast %59 : vector<1x1x8x16xf32> to vector<8x16xf32>
    %61 = vector.shape_cast %55#2 : vector<8x16xf32> to vector<1x1x8x16xf32>
    tpu.vector_store %arg3[%c0_15, %c1, %c0_16, %c0_17], %61 {strides = array<i32>} : memref<1x3x8x16xf32, #tpu.memory_space<vmem>>, vector<1x1x8x16xf32>,
    %c0_18 = arith.constant 0 : index
    %c2 = arith.constant 2 : index
    %c0_19 = arith.constant 0 : index
    %c0_20 = arith.constant 0 : index
    %62 = vector.load %arg3[%c0_18, %c2, %c0_19, %c0_20] : memref<1x3x8x16xf32, #tpu.memory_space<vmem>>, vector<1x1x8x16xf32>
    %63 = vector.shape_cast %62 : vector<1x1x8x16xf32> to vector<8x16xf32>
    %64 = vector.shape_cast %55#3 : vector<8x16xf32> to vector<1x1x8x16xf32>
    tpu.vector_store %arg3[%c0_18, %c2, %c0_19, %c0_20], %64 {strides = array<i32>} : memref<1x3x8x16xf32, #tpu.memory_space<vmem>>, vector<1x1x8x16xf32>,
    return
  }
  func.func @transform_0(%arg0: i32) -> (i32, i32, i32) {
    %c0_i32 = arith.constant 0 : i32
    %c0_i32_0 = arith.constant 0 : i32
    %c0_i32_1 = arith.constant 0 : i32
    return %arg0, %c0_i32, %c0_i32_0 : i32, i32, i32
  }
  func.func @transform_1(%arg0: i32) -> (i32, i32, i32) {
    %c0_i32 = arith.constant 0 : i32
    %c0_i32_0 = arith.constant 0 : i32
    %c0_i32_1 = arith.constant 0 : i32
    return %arg0, %c0_i32, %c0_i32_0 : i32, i32, i32
  }
  func.func @transform_2(%arg0: i32) -> (i32, i32, i32, i32) {
    %c0_i32 = arith.constant 0 : i32
    %c0_i32_0 = arith.constant 0 : i32
    %c0_i32_1 = arith.constant 0 : i32
    %c0_i32_2 = arith.constant 0 : i32
    return %arg0, %c0_i32, %c0_i32_0, %c0_i32_1 : i32, i32, i32, i32
  }
}

</mosaic_0001>

<llo_original>
// kernel: tpu_custom_call.1
$region0: #{tpu_custom_call.1}
  #allocation0 [shape = 'u32[]', space=smem, size = 0x4, offset = 0x4, fixed_abs, tag = 'smem constant byte address 0x4 - core index']
  #allocation1 [shape = 'u32[144,128]{1,0:T(1,128)}', space=vmem, size = 0x12000, scoped, tag = 'internal scratch']
  %s0 = inlined_call_operand.vmem [shape: f32[2,3,128], index: 0, kind: input, shape index: {}]
  %s1 = inlined_call_operand.vmem [shape: f32[2,3,8], index: 1, kind: output, shape index: {0}]
  %s2 = inlined_call_operand.hbm [shape: f32[2,3,8,16], index: 2, kind: output, shape index: {1}]
  %3 = xla_tuple %s1, %s2
  %s4 = sld [smem:[#allocation0]]
  $region59: #{tpu_custom_call.1} parent=0
    _
  %s6 = ssub.s32 1, %s4
  %s7 = scalar_select 0, %s6, %s4
  $region1: #{tpu_custom_call.1} parent=0
    #allocation2 [shape = 'u8[24576]{0}', space=vmem, size = 0x6000, scoped, tag = 'output window, operand 1']
    #allocation3 [shape = 's32[2]{0}', space=sflag, size = 0x8, scoped, tag = 'scoped memory for tpu_custom_call.1']
    %8 = vsyncpa [#allocation3], 0
    %s9 = scalar_lea.sflag [#allocation3], 1
    %10 = vsyncpa %s9, 0
    loop: start=0, step=1, limit=4
    $region2: #{tpu_custom_call.1} parent=1 // loop_pre_header
      _
    $region3: #{tpu_custom_call.1} parent=1 // loop_header
      %s12 = sphi 0, %s16
      %p13 = scmp.ge.s32.totalorder %s12, 4
      %s22 = sphi 0, %s24
      %s25 = sphi 0, %s22
      %s26 = sphi 0, %s25
      %s42 = sphi 0, %s26
      %s48 = sphi 0, %s50
      %s51 = sphi 0, %s48
      %s52 = sphi 0, %s51
      %s68 = sphi 0, %s52
      %s74 = sphi 0, %s76
      %s77 = sphi 0, %s74
      %s78 = sphi 0, %s77
      %s94 = sphi 0, %s78
    $region4: #{tpu_custom_call.1} parent=1 // loop_header_branch
      %15 = sbr.rel (%p13) target = $region8
    $region5: #{tpu_custom_call.1} parent=1 // loop_body
      %s17 = ssub.s32 %s12, 1
      %s18 = ssub.s32 %s12, 2
      %s19 = sadd.s32 %s12, 1
      %s20 = ssub.s32 %s12, %s19
      %p21 = scmp.eq.s32.totalorder %s20, 0
      %s23 = sadd.s32 %s22, 1
      %s24 = scalar_select %p21, %s22, %s23
      %p27 = pneg %p21
      %p28 = scmp.eq.s32.totalorder %s12, 1
      %p29 = por %p27, %p28
      %p30 = scmp.ne.s32.totalorder %s22, %s25
      %p31 = scmp.eq.s32.totalorder %s12, 0
      %p32 = por %p30, %p31
      %p33 = scmp.ne.s32.totalorder %s22, %s25
      %p34 = scmp.eq.s32.totalorder %s17, 1
      %p35 = por %p33, %p34
      %p36 = scmp.ne.s32.totalorder %s25, %s26
      %p37 = scmp.eq.s32.totalorder %s17, 0
      %p38 = por %p36, %p37
      %p39 = scmp.ne.s32.totalorder %s25, %s26
      %p40 = scmp.eq.s32.totalorder %s18, 1
      %p41 = por %p39, %p40
      %p43 = scmp.ne.s32.totalorder %s26, %s42
      %p44 = scmp.eq.s32.totalorder %s18, 0
      %p45 = por %p43, %p44
      %s46 = ssub.s32 %s12, %s19
      %p47 = scmp.eq.s32.totalorder %s46, 0
      %s49 = sadd.s32 %s48, 1
      %s50 = scalar_select %p47, %s48, %s49
      %p53 = pneg %p47
      %p54 = scmp.eq.s32.totalorder %s12, 1
      %p55 = por %p53, %p54
      %p56 = scmp.ne.s32.totalorder %s48, %s51
      %p57 = scmp.eq.s32.totalorder %s12, 0
      %p58 = por %p56, %p57
      %p59 = scmp.ne.s32.totalorder %s48, %s51
      %p60 = scmp.eq.s32.totalorder %s17, 1
      %p61 = por %p59, %p60
      %p62 = scmp.ne.s32.totalorder %s51, %s52
      %p63 = scmp.eq.s32.totalorder %s17, 0
      %p64 = por %p62, %p63
      %p65 = scmp.ne.s32.totalorder %s51, %s52
      %p66 = scmp.eq.s32.totalorder %s18, 1
      %p67 = por %p65, %p66
      %p69 = scmp.ne.s32.totalorder %s52, %s68
      %p70 = scmp.eq.s32.totalorder %s18, 0
      %p71 = por %p69, %p70
      %s72 = ssub.s32 %s12, %s19
      %p73 = scmp.eq.s32.totalorder %s72, 0
      %s75 = sadd.s32 %s74, 1
      %s76 = scalar_select %p73, %s74, %s75
      %p79 = pneg %p73
      %p80 = scmp.eq.s32.totalorder %s12, 1
      %p81 = por %p79, %p80
      %p82 = scmp.ne.s32.totalorder %s74, %s77
      %p83 = scmp.eq.s32.totalorder %s12, 0
      %p84 = por %p82, %p83
      %p85 = scmp.ne.s32.totalorder %s74, %s77
      %p86 = scmp.eq.s32.totalorder %s17, 1
      %p87 = por %p85, %p86
      %p88 = scmp.ne.s32.totalorder %s77, %s78
      %p89 = scmp.eq.s32.totalorder %s17, 0
      %p90 = por %p88, %p89
      %p91 = scmp.ne.s32.totalorder %s77, %s78
      %p92 = scmp.eq.s32.totalorder %s18, 1
      %p93 = por %p91, %p92
      %p95 = scmp.ne.s32.totalorder %s78, %s94
      %p96 = scmp.eq.s32.totalorder %s18, 0
      %p97 = por %p95, %p96
      %p98 = scmp.le.s32.totalorder 1, %s12
      %p99 = scmp.lt.s32.totalorder %s12, 3
      %p100 = pnand %p98, %p99
      %p101 = pneg %p100
      // Predicated region
      $region9: #{tpu_custom_call.1} parent=5 // pred_check
        _
      $region10: #{tpu_custom_call.1} parent=5 // pred_check_branch
        %103 = sbr.rel (%p100) target = $region12
      $region11: #{tpu_custom_call.1} parent=5 // pred_region
        %s104 = ssub.s32 %s12, 1
      $region12: #{tpu_custom_call.1} parent=5 // pred_fallthru
        _
      %p105 = scmp.lt.s32.totalorder %s12, 2
      // Predicated region
      $region13: #{tpu_custom_call.1} parent=5 // pred_check
        %p106 = pneg %p105
      $region14: #{tpu_custom_call.1} parent=5 // pred_check_branch
        %108 = sbr.rel (%p106) target = $region16
      $region15: #{tpu_custom_call.1} parent=5 // pred_region
        // Predicated region
        $region17: #{tpu_custom_call.1} parent=15 // pred_check
          %p109 = pneg %p32
        $region18: #{tpu_custom_call.1} parent=15 // pred_check_branch
          %111 = sbr.rel (%p109) target = $region20
        $region19: #{tpu_custom_call.1} parent=15 // pred_region
          %p112 = scmp.lt.s32.totalorder %s12, 1
          %s113 = scalar_select %p112, %s12, 1
          %s114 = smul.addr %s113, 4
          %s115 = scalar_lea.vmem %s0, %s114
        $region20: #{tpu_custom_call.1} parent=15 // pred_fallthru
          _
      $region16: #{tpu_custom_call.1} parent=5 // pred_fallthru
        _
      %p116 = scmp.le.s32.totalorder 1, %s12
      %p117 = scmp.lt.s32.totalorder %s12, 3
      %p118 = pnand %p116, %p117
      %p119 = pneg %p118
      // Predicated region
      $region21: #{tpu_custom_call.1} parent=5 // pred_check
        _
      $region22: #{tpu_custom_call.1} parent=5 // pred_check_branch
        %121 = sbr.rel (%p118) target = $region24
      $region23: #{tpu_custom_call.1} parent=5 // pred_region
        %s122 = ssub.s32 %s12, 1
        %p123 = scmp.lt.s32.totalorder %s17, 1
        %s124 = scalar_select %p123, %s17, 1
        %s125 = smul.addr %s124, 4
        %s126 = scalar_lea.vmem %s0, %s125
        %p127 = pneg %p38
        %p128 = pneg %p35
        %p129 = pneg %p64
        %p130 = pneg %p61
        %p131 = scmp.lt.s32.totalorder %s17, 1
        %s132 = scalar_select %p131, %s17, 1
        %s133 = smul.addr %s132, 4
        %s134 = scalar_lea.vmem %s1, %s133
        %p135 = pneg %p90
        %p136 = pneg %p87
        %s137 = sand.u32 %s77, 1
        %s138 = scalar_lea.sflag [#allocation3], %s137
        %s139 = sand.u32 %s77, 1
        %s140 = smul.addr %s139, 24
        %s141 = scalar_lea.vmem [#allocation2], %s140
        %p142 = scmp.lt.s32.totalorder %s17, 1
        %s143 = scalar_select %p142, %s17, 1
        %s144 = smul.addr %s143, 4
        %s145 = scalar_lea.vmem %s0, %s144
        %p146 = scmp.lt.s32.totalorder %s17, 1
        %s147 = scalar_select %p146, %s17, 1
        %s148 = smul.addr %s147, 4
        %s149 = scalar_lea.vmem %s1, %s148
        %v150 = vld [vmem:[%s145] sm:$0x7]
        %v151 = vlaneseq
        %v152 = vand.u32 %v151, 127
        %154 = vset.pattern.permute.xlu0 0
        %155 = vperm.xlu0 %154, %v150
        %v156 = vpop.permute.xlu0 %155
        %v158 = vsub.f32 %v150, %v156
        %v159 = vmul.f32 %v158, %v158
        %v161 = vrot.slane %v159, 1
        %v163 = vadd.f32 %v159, %v161
        %v164 = vrot.slane %v159, 2
        %v166 = vadd.f32 %v163, %v164
        %vm167 = vcmp.eq.s32.totalorder %v152, 0
        %v168 = vsel %vm167, %v156, 0.0
        loop: start=1, step=1, limit=8
        $region25: #{tpu_custom_call.1} parent=23 // loop_pre_header
          _
        $region26: #{tpu_custom_call.1} parent=23 // loop_header
          %s170 = sphi 1, %s174
          %p171 = scmp.ge.s32.totalorder %s170, 8
          %v175 = vphi %v166, %v219
          %v176 = vphi %v168, %v222
        $region27: #{tpu_custom_call.1} parent=23 // loop_header_branch
          %173 = sbr.rel (%p171) target = $region31
        $region28: #{tpu_custom_call.1} parent=23 // loop_body
          %vm177 = vcmask 1040384
          %v178 = vsel %vm177, %v175, -inf
          %179 = vmax.xlane.f32.xlu0 %v178
          %v180 = vpop.xlane.xlu0 %179
          %vm181 = vcmp.ge.f32.partialorder %v175, %v180
          %v182 = vsel %vm181, %v152, 128
          %v183 = vsel %vm177, %v182, 2147483647
          %v184 = vand.u32 %v183, 65535
          %v185 = vshra.s32 %v183, 16
          %v186 = vcvt.s32.f32 %v184
          %v187 = vcvt.s32.f32 %v185
          %188 = vmin.xlane.f32.xlu0 %v187
          %v189 = vpop.xlane.xlu0 %188
          %vm190 = vcmp.eq.f32.partialorder %v187, %v189
          %v191 = vsel %vm190, %v186, inf
          %192 = vmin.xlane.f32.xlu0 %v191
          %v193 = vpop.xlane.xlu0 %192
          %v194 = vcvt.f32.s32 %v193
          %v195 = vcvt.f32.s32 %v189
          %v196 = vshll.u32 %v195, 16
          %v197 = vadd.s32 %v196, %v194
          %vm198 = vcmp.eq.s32.totalorder %v152, %v197
          %v199 = vsel %vm198, 1, 0
          %v200 = vlaneseq
          %v201 = vshrl.u32 %v200, 7
          %v202 = vsub.s32 0, %v201
          %v203 = vrot.slane %v199, %v202
          %vm204 = vcmp.eq.s32.totalorder %v203, 1
          %v205 = vsel %vm204, %v150, 0.0
          %vm206 = vcmask 1042432
          %v207 = vsel %vm206, %v205, 0.0
          %208 = vadd.xlane.f32.xlu0 %v207
          %v209 = vpop.xlane.xlu0 %208
          %v210 = vsub.f32 %v150, %v209
          %v211 = vmul.f32 %v210, %v210
          %v213 = vrot.slane %v211, 1
          %v215 = vadd.f32 %v211, %v213
          %v216 = vrot.slane %v211, 2
          %v218 = vadd.f32 %v215, %v216
          %v219 = vmin.f32 %v175, %v218
          %v220 = vstv %s170
          %vm221 = vcmp.eq.s32.totalorder %v152, %v220
          %v222 = vsel %vm221, %v209, %v176
        $region29: #{tpu_custom_call.1} parent=23 // loop_footer
          %s174 = sadd.s32 1, %s170
        $region30: #{tpu_custom_call.1} parent=23 // loop_footer_branch
          %169 = sbr.rel target = $region26
        $region31: #{tpu_custom_call.1} parent=23 // loop_exit
          _
        %vm223 = vcmask 59392
        %224 = vst.msk [vmem:[%s149] sm:$0x7] %vm223, %v176
        %225 = vxpose.xlu0.b32.start [1/16] %v176, 128
        %226 = vxpose.xlu0.b32.cont [2/16] 0.0, 128
        %227 = vxpose.xlu0.b32.cont [3/16] 0.0, 128
        %228 = vxpose.xlu0.b32.cont [4/16] 0.0, 128
        %229 = vxpose.xlu0.b32.cont [5/16] 0.0, 128
        %230 = vxpose.xlu0.b32.cont [6/16] 0.0, 128
        %231 = vxpose.xlu0.b32.cont [7/16] 0.0, 128
        %232 = vxpose.xlu0.b32.cont [8/16] 0.0, 128
        %233 = vxpose.xlu0.b32.cont [9/16] 0.0, 128
        %234 = vxpose.xlu0.b32.cont [10/16] 0.0, 128
        %235 = vxpose.xlu0.b32.cont [11/16] 0.0, 128
        %236 = vxpose.xlu0.b32.cont [12/16] 0.0, 128
        %237 = vxpose.xlu0.b32.cont [13/16] 0.0, 128
        %238 = vxpose.xlu0.b32.cont [14/16] 0.0, 128
        %239 = vxpose.xlu0.b32.cont [15/16] 0.0, 128
        %240 = vxpose.xlu0.b32.end [16/16] 0.0, 128
        %v241 = vpop.trf.xlu0
        %v242 = vpop.trf.xlu0
        %v243 = vpop.trf.xlu0
        %v244 = vpop.trf.xlu0
        %v245 = vpop.trf.xlu0
        %v246 = vpop.trf.xlu0
        %v247 = vpop.trf.xlu0
        %v248 = vpop.trf.xlu0
        %v249 = vpop.trf.xlu0
        %v250 = vpop.trf.xlu0
        %v251 = vpop.trf.xlu0
        %v252 = vpop.trf.xlu0
        %v253 = vpop.trf.xlu0
        %v254 = vpop.trf.xlu0
        %v255 = vpop.trf.xlu0
        %v256 = vpop.trf.xlu0
        %v257 = vlaneseq
        %v258 = vshrl.u32 %v257, 7
        %v259 = vsub.s32 0, %v258
        %v260 = vrot.slane %v150, %v259
        %262 = vset.pattern.permute.xlu0 0
        %263 = vperm.xlu0 %262, %v241
        %v264 = vpop.permute.xlu0 %263
        %v266 = vsub.f32 %v260, %v264
        %v267 = vmul.f32 %v266, %v266
        %v268 = vlaneseq
        %v269 = vshrl.u32 %v268, 7
        %v270 = vsub.s32 1, %v269
        %v271 = vrot.slane %v150, %v270
        %272 = vset.pattern.permute.xlu0 1
        %273 = vperm.xlu0 %272, %v241
        %v274 = vpop.permute.xlu0 %273
        %v276 = vsub.f32 %v271, %v274
        %v277 = vmul.f32 %v276, %v276
        %v278 = vadd.f32 %v267, %v277
        %v279 = vlaneseq
        %v280 = vshrl.u32 %v279, 7
        %v281 = vsub.s32 2, %v280
        %v282 = vrot.slane %v150, %v281
        %283 = vset.pattern.permute.xlu0 2
        %284 = vperm.xlu0 %283, %v241
        %v285 = vpop.permute.xlu0 %284
        %v287 = vsub.f32 %v282, %v285
        %v288 = vmul.f32 %v287, %v287
        %v289 = vadd.f32 %v278, %v288
        loop: start=0, step=1, limit=16
        $region32: #{tpu_custom_call.1} parent=23 // loop_pre_header
          _
        $region33: #{tpu_custom_call.1} parent=23 // loop_header
          %s291 = sphi 0, %s295
          %p292 = scmp.ge.s32.totalorder %s291, 16
          %v296 = vphi %v289, %v351
          %v297 = vphi 0.0, %v336
          %v298 = vphi 0.0, %v343
          %v299 = vphi 0.0, %v350
        $region34: #{tpu_custom_call.1} parent=23 // loop_header_branch
          %294 = sbr.rel (%p292) target = $region38
        $region35: #{tpu_custom_call.1} parent=23 // loop_body
          %300 = vmin.xlane.f32.xlu0 %v296
          %v301 = vpop.xlane.xlu0 %300
          %vm302 = vcmp.le.f32.partialorder %v296, %v301
          %v303 = vsel %vm302, %v152, 128
          %v304 = vand.u32 %v303, 65535
          %v305 = vshra.s32 %v303, 16
          %v306 = vcvt.s32.f32 %v304
          %v307 = vcvt.s32.f32 %v305
          %308 = vmin.xlane.f32.xlu0 %v307
          %v309 = vpop.xlane.xlu0 %308
          %vm310 = vcmp.eq.f32.partialorder %v307, %v309
          %v311 = vsel %vm310, %v306, inf
          %312 = vmin.xlane.f32.xlu0 %v311
          %v313 = vpop.xlane.xlu0 %312
          %v314 = vcvt.f32.s32 %v313
          %v315 = vcvt.f32.s32 %v309
          %v316 = vshll.u32 %v315, 16
          %v317 = vadd.s32 %v316, %v314
          %vm318 = vcmp.eq.s32.totalorder %v152, %v317
          %v319 = vsel %vm318, %v260, 0.0
          %320 = vadd.xlane.f32.xlu0 %v319
          %v321 = vpop.xlane.xlu0 %320
          %v322 = vsel %vm318, %v271, 0.0
          %323 = vadd.xlane.f32.xlu0 %v322
          %v324 = vpop.xlane.xlu0 %323
          %v325 = vsel %vm318, %v282, 0.0
          %326 = vadd.xlane.f32.xlu0 %v325
          %v327 = vpop.xlane.xlu0 %326
          %v328 = vstv %s291
          %vm329 = vcmp.eq.s32.totalorder %v152, %v328
          %v330 = vsub.f32 %v321, %v241
          %332 = vset.pattern.permute.xlu0 0
          %333 = vperm.xlu0 %332, %v330
          %v334 = vpop.permute.xlu0 %333
          %v336 = vsel %vm329, %v334, %v297
          %v337 = vsub.f32 %v324, %v241
          %339 = vset.pattern.permute.xlu0 1
          %340 = vperm.xlu0 %339, %v337
          %v341 = vpop.permute.xlu0 %340
          %v343 = vsel %vm329, %v341, %v298
          %v344 = vsub.f32 %v327, %v241
          %346 = vset.pattern.permute.xlu0 2
          %347 = vperm.xlu0 %346, %v344
          %v348 = vpop.permute.xlu0 %347
          %v350 = vsel %vm329, %v348, %v299
          %v351 = vsel %vm318, 1e+30, %v296
        $region36: #{tpu_custom_call.1} parent=23 // loop_footer
          %s295 = sadd.s32 1, %s291
        $region37: #{tpu_custom_call.1} parent=23 // loop_footer_branch
          %290 = sbr.rel target = $region33
        $region38: #{tpu_custom_call.1} parent=23 // loop_exit
          _
        %vm352 = vcmask 130048
        %353 = vst.msk [vmem:[%s141] sm:$0xff] %vm352, %v297
        %s354 = scalar_lea.vmem %s141, 8 [#allocation2]
        %355 = vst.msk [vmem:[%s354] sm:$0xff] %vm352, %v298
        %s356 = scalar_lea.vmem %s141, 16 [#allocation2]
        %357 = vst.msk [vmem:[%s356] sm:$0xff] %vm352, %v299
        %p358 = scmp.lt.s32.totalorder %s17, 1
        %s359 = scalar_select %p358, %s17, 1
        %s360 = smul.addr %s359, 4
        %s361 = scalar_lea.vmem %s1, %s360
        %s362 = sand.u32 %s77, 1
        %s363 = scalar_lea.sflag [#allocation3], %s362
        %s364 = sand.u32 %s77, 1
        %s365 = smul.addr %s364, 24
        %s366 = scalar_lea.vmem [#allocation2], %s365
        // Predicated region
        $region39: #{tpu_custom_call.1} parent=23 // pred_check
          %p367 = pneg %p61
        $region40: #{tpu_custom_call.1} parent=23 // pred_check_branch
          %369 = sbr.rel (%p367) target = $region42
        $region41: #{tpu_custom_call.1} parent=23 // pred_region
          _
        $region42: #{tpu_custom_call.1} parent=23 // pred_fallthru
          _
        // Predicated region
        $region43: #{tpu_custom_call.1} parent=23 // pred_check
          %p370 = pneg %p87
        $region44: #{tpu_custom_call.1} parent=23 // pred_check_branch
          %372 = sbr.rel (%p370) target = $region46
        $region45: #{tpu_custom_call.1} parent=23 // pred_region
          %s374 = ssub.s32 384, 384
          %375 = vsyncadd %s363, %s374
          %s376 = smul.addr %s17, 3
          %s377 = smul.addr %s376, 128
          %s378 = scalar_lea.hbm %s2, %s377
          %s379 = sshll.u32 %s366, 4
          %s380 = int_to_ptr.vmem [resolvable:$true] %s379
          %385 = dma.vmem_to_hbm [thread:$0]  %s380, 384, %s378, %s363, 128, 128, 8
        $region46: #{tpu_custom_call.1} parent=23 // pred_fallthru
          _
      $region24: #{tpu_custom_call.1} parent=5 // pred_fallthru
        _
      %p386 = scmp.le.s32.totalorder 2, %s12
      // Predicated region
      $region47: #{tpu_custom_call.1} parent=5 // pred_check
        %p387 = pneg %p386
      $region48: #{tpu_custom_call.1} parent=5 // pred_check_branch
        %389 = sbr.rel (%p387) target = $region50
      $region49: #{tpu_custom_call.1} parent=5 // pred_region
        %s390 = ssub.s32 %s12, 2
        // Predicated region
        $region51: #{tpu_custom_call.1} parent=49 // pred_check
          %p391 = pneg %p67
        $region52: #{tpu_custom_call.1} parent=49 // pred_check_branch
          %393 = sbr.rel (%p391) target = $region54
        $region53: #{tpu_custom_call.1} parent=49 // pred_region
          %p394 = scmp.lt.s32.totalorder %s18, 1
          %s395 = scalar_select %p394, %s18, 1
          %s396 = smul.addr %s395, 4
          %s397 = scalar_lea.vmem %s1, %s396
        $region54: #{tpu_custom_call.1} parent=49 // pred_fallthru
          _
        // Predicated region
        $region55: #{tpu_custom_call.1} parent=49 // pred_check
          %p398 = pneg %p93
        $region56: #{tpu_custom_call.1} parent=49 // pred_check_branch
          %400 = sbr.rel (%p398) target = $region58
        $region57: #{tpu_custom_call.1} parent=49 // pred_region
          %s401 = sand.u32 %s78, 1
          %s402 = scalar_lea.sflag [#allocation3], %s401
          %s403 = sand.u32 %s78, 1
          %s404 = smul.addr %s403, 24
          %s405 = scalar_lea.vmem [#allocation2], %s404
          %406 = dma.done %s402, 384
        $region58: #{tpu_custom_call.1} parent=49 // pred_fallthru
          _
      $region50: #{tpu_custom_call.1} parent=5 // pred_fallthru
        _
    $region6: #{tpu_custom_call.1} parent=1 // loop_footer
      %s16 = sadd.s32 1, %s12
    $region7: #{tpu_custom_call.1} parent=1 // loop_footer_branch
      %11 = sbr.rel target = $region3
    $region8: #{tpu_custom_call.1} parent=1 // loop_exit
      _
    %407 = vsyncpa [#allocation3], 1
    %s408 = scalar_lea.sflag [#allocation3], 1
    %409 = vsyncpa %s408, 1

</llo_original>
